<compile_context>
chip_gen: v7x
topology: tpu7x:2x2x1
jax: 0.10.0
libtpu: 0.0.40
codegen_flags: <defaults>
</compile_context>

<pallas_src>
import jax
import jax.numpy as jnp
from jax.experimental import pallas as pl
from jax.experimental.pallas import tpu as pltpu

INPUT_SIZE = 5
HIDDEN_SIZE = 30
OUTPUT_SIZE = 1
HIDDEN_PAD = 32  # 30 -> 32: exact sublane granule for the [H, TILE_B] f32 intermediates

# Contract the LAST dim of both operands (lhs [M,K] x rhs [N,K] -> [M,N]); this is the
# proven "trans_b" MXU path (identical dimension numbers to q @ k.T in flash attention),
# so no explicit in-kernel transpose of the batch-major x block is materialized.
_TRANS_B = (((1,), (1,)), ((), ()))


def _round_up(n, m):
    return ((n + m - 1) // m) * m


def mlp_kernel(x_ref, w1_ref, b1_ref, w2_ref, b2_ref, w3_ref, b3_ref, o_ref):
    # x_ref: [TILE_B, INPUT_SIZE] f32 streamed straight from HBM (contiguous DMA).
    # w*_ref: bf16 [out, in] (hidden padded to 32), VMEM-resident.  b*_ref: f32 [out, 1].
    x = x_ref[...]
    w1 = w1_ref[...].astype(jnp.float32)   # tiny one-off upcasts (32x5 / 32x32 / 1x32)
    w2 = w2_ref[...].astype(jnp.float32)
    w3 = w3_ref[...].astype(jnp.float32)

    # fc1 + ReLU: contract INPUT_SIZE of w1[H,IN] with trailing dim of x[TB,IN] -> [H, TILE_B]
    h1 = jax.lax.dot_general(w1, x, _TRANS_B, preferred_element_type=jnp.float32)
    h1 = jnp.maximum(h1 + b1_ref[...], 0.0)
    # fc2 + ReLU (f32 activations throughout: no epilogue casts in the VALU slot)
    h2 = jnp.dot(w2, h1, preferred_element_type=jnp.float32)
    h2 = jnp.maximum(h2 + b2_ref[...], 0.0)
    # fc3 (no activation)
    out = jnp.dot(w3, h2, preferred_element_type=jnp.float32) + b3_ref[...]
    o_ref[...] = out.astype(o_ref.dtype)    # [OUTPUT_SIZE, TILE_B] lane-dense store


def mlp_forward(x, params, *, max_tile_b=8192):
    """x: [B, INPUT_SIZE] float32.  params: PyTorch layout (w [out,in], b [out])."""
    w1, b1, w2, b2, w3, b3 = params
    B = x.shape[0]

    # ---- adaptive batch tiling -------------------------------------------------------
    # Biggest tile that fits comfortably; >= 2 tiles whenever B > 128 (v7x has 2 TCs and
    # the batch axis is marked "parallel"); tile is a 128 multiple sized so padding waste
    # per tile stays < 128 rows.
    max_tile_b = max(128, _round_up(max_tile_b, 128))
    steps = pl.cdiv(B, max_tile_b)
    if steps == 1 and B > 128:
        steps = 2
    tile_b = _round_up(pl.cdiv(B, steps), 128)
    steps = pl.cdiv(B, tile_b)
    b_pad = steps * tile_b

    x = x.astype(jnp.float32)
    if b_pad != B:
        x = jnp.pad(x, ((0, b_pad - B), (0, 0)))   # batch-only pad (no transpose/cast pass)

    # ---- one-time (tiny) weight prep: zero-pad hidden 30 -> 32, cast weights to bf16 ---
    hp = HIDDEN_PAD - HIDDEN_SIZE
    w1p = jnp.pad(w1, ((0, hp), (0, 0))).astype(jnp.bfloat16)                    # [32, 5]
    b1p = jnp.pad(jnp.reshape(b1, (-1, 1)), ((0, hp), (0, 0))).astype(jnp.float32)  # [32, 1]
    w2p = jnp.pad(w2, ((0, hp), (0, hp))).astype(jnp.bfloat16)                   # [32, 32]
    b2p = jnp.pad(jnp.reshape(b2, (-1, 1)), ((0, hp), (0, 0))).astype(jnp.float32)  # [32, 1]
    w3p = jnp.pad(w3, ((0, 0), (0, hp))).astype(jnp.bfloat16)                    # [1, 32]
    b3p = jnp.reshape(b3, (-1, 1)).astype(jnp.float32)                           # [1, 1]

    def resident(arr):
        # Whole-array block + constant index_map -> stays in VMEM across all grid steps.
        nd = arr.ndim
        return pl.BlockSpec(arr.shape, lambda i, _n=nd: (0,) * _n)

    flops = 2 * b_pad * (INPUT_SIZE * HIDDEN_PAD + HIDDEN_PAD * HIDDEN_PAD
                         + HIDDEN_PAD * OUTPUT_SIZE)
    bytes_accessed = (b_pad * INPUT_SIZE * 4 + b_pad * OUTPUT_SIZE * 4
                      + (w1p.size + w2p.size + w3p.size) * 2
                      + (b1p.size + b2p.size + b3p.size) * 4)

    out_t = pl.pallas_call(
        mlp_kernel,
        out_shape=jax.ShapeDtypeStruct((OUTPUT_SIZE, b_pad), jnp.float32),
        grid=(steps,),
        in_specs=[
            pl.BlockSpec((tile_b, INPUT_SIZE), lambda i: (i, 0)),  # streamed activations
            resident(w1p), resident(b1p),
            resident(w2p), resident(b2p),
            resident(w3p), resident(b3p),
        ],
        out_specs=pl.BlockSpec((OUTPUT_SIZE, tile_b), lambda i: (0, i)),
        compiler_params=pltpu.CompilerParams(
            dimension_semantics=("parallel",),
            vmem_limit_bytes=32 * 1024 * 1024,
        ),
        cost_estimate=pl.CostEstimate(
            flops=flops, transcendentals=0, bytes_accessed=bytes_accessed),
    )(x, w1p, b1p, w2p, b2p, w3p, b3p)

    # Back to PyTorch convention [B, OUTPUT_SIZE], dropping batch padding.
    return out_t[:, :B].T


def init_params(key):
    """nn.Linear-style init: U(-1/sqrt(fan_in), 1/sqrt(fan_in)); w [out,in], b [out]."""
    keys = jax.random.split(key, 6)

    def linear(kw, kb, fan_in, fan_out):
        bound = 1.0 / jnp.sqrt(fan_in)
        w = jax.random.uniform(kw, (fan_out, fan_in), jnp.float32, -bound, bound)
        b = jax.random.uniform(kb, (fan_out,), jnp.float32, -bound, bound)
        return w, b

    w1, b1 = linear(keys[0], keys[1], INPUT_SIZE, HIDDEN_SIZE)
    w2, b2 = linear(keys[2], keys[3], HIDDEN_SIZE, HIDDEN_SIZE)
    w3, b3 = linear(keys[4], keys[5], HIDDEN_SIZE, OUTPUT_SIZE)
    return (w1, b1, w2, b2, w3, b3)


def reference_forward_f32(x, params):
    """Pure-f32 reference matching the PyTorch module semantics."""
    w1, b1, w2, b2, w3, b3 = params
    h1 = jnp.maximum(x @ w1.T + b1[None, :], 0.0)
    h2 = jnp.maximum(h1 @ w2.T + b2[None, :], 0.0)
    return h2 @ w3.T + b3[None, :]


def reference_forward_mirror(x, params):
    """Reference mirroring kernel precision: bf16-rounded weights, f32 activations/accum."""
    w1, b1, w2, b2, w3, b3 = params
    r = lambda w: w.astype(jnp.bfloat16).astype(jnp.float32)
    h1 = jnp.maximum(x @ r(w1).T + b1[None, :], 0.0)
    h2 = jnp.maximum(h1 @ r(w2).T + b2[None, :], 0.0)
    return h2 @ r(w3).T + b3[None, :]


if __name__ == "__main__":
    key = jax.random.PRNGKey(0)
    k_x, k_x2, k_x3, k_p = jax.random.split(key, 4)
    params = init_params(k_p)

    # Small batch consistent with the module (single 128-lane tile internally).
    batch = 8
    x = jax.random.normal(k_x, (batch, INPUT_SIZE), dtype=jnp.float32)
    out = jax.block_until_ready(mlp_forward(x, params))
    assert out.shape == (batch, OUTPUT_SIZE)
    assert jnp.allclose(out, reference_forward_mirror(x, params), atol=5e-3, rtol=5e-3)
    assert jnp.allclose(out, reference_forward_f32(x, params), atol=2e-2, rtol=2e-2)

    # Multi-step grid with batch padding (B=300 -> 2 tiles of 256, pad sliced off).
    batch2 = 300
    x2 = jax.random.normal(k_x2, (batch2, INPUT_SIZE), dtype=jnp.float32)
    out2 = jax.block_until_ready(mlp_forward(x2, params))
    assert out2.shape == (batch2, OUTPUT_SIZE)
    assert jnp.allclose(out2, reference_forward_mirror(x2, params), atol=5e-3, rtol=5e-3)

    # Exact-fit batch: splits into 2 tiles (both v7x TensorCores busy), no padding.
    batch3 = 4096
    x3 = jax.random.normal(k_x3, (batch3, INPUT_SIZE), dtype=jnp.float32)
    out3 = jax.block_until_ready(mlp_forward(x3, params))
    assert out3.shape == (batch3, OUTPUT_SIZE)
    assert jnp.allclose(out3, reference_forward_mirror(x3, params), atol=5e-3, rtol=5e-3)

    print("KERNEL_OK")
</pallas_src>

<mosaic_0001>
module attributes {stable_mosaic.version = 11 : i64} {
  func.func @mlp_kernel(%arg0: i32, %arg1: memref<128x5xf32, #tpu.memory_space<vmem>>, %arg2: memref<32x5xbf16, #tpu.memory_space<vmem>>, %arg3: memref<32x1xf32, #tpu.memory_space<vmem>>, %arg4: memref<32x32xbf16, #tpu.memory_space<vmem>>, %arg5: memref<32x1xf32, #tpu.memory_space<vmem>>, %arg6: memref<1x32xbf16, #tpu.memory_space<vmem>>, %arg7: memref<1x1xf32, #tpu.memory_space<vmem>>, %arg8: memref<1x128xf32, #tpu.memory_space<vmem>>) attributes {dimension_semantics = [#tpu.dimension_semantics<parallel>], iteration_bounds = array<i64: 1>, scalar_prefetch = 0 : i64, scratch_operands = 0 : i64, tpu.core_type = #tpu.core_type<tc>, window_params = [{transform_indices = @transform_0, window_bounds = array<i64: 128, 5>}, {pipeline_mode = #tpu.pipeline_mode<synchronous>, transform_indices = @transform_1, window_bounds = array<i64: 32, 5>}, {pipeline_mode = #tpu.pipeline_mode<synchronous>, transform_indices = @transform_2, window_bounds = array<i64: 32, 1>}, {pipeline_mode = #tpu.pipeline_mode<synchronous>, transform_indices = @transform_3, window_bounds = array<i64: 32, 32>}, {pipeline_mode = #tpu.pipeline_mode<synchronous>, transform_indices = @transform_4, window_bounds = array<i64: 32, 1>}, {pipeline_mode = #tpu.pipeline_mode<synchronous>, transform_indices = @transform_5, window_bounds = array<i64: 1, 32>}, {pipeline_mode = #tpu.pipeline_mode<synchronous>, transform_indices = @transform_6, window_bounds = array<i64: 1, 1>}, {transform_indices = @transform_7, window_bounds = array<i64: 1, 128>}]} {
    %c0 = arith.constant 0 : index
    %c0_0 = arith.constant 0 : index
    %0 = vector.load %arg1[%c0, %c0_0] : memref<128x5xf32, #tpu.memory_space<vmem>>, vector<128x5xf32>
    %c0_1 = arith.constant 0 : index
    %c0_2 = arith.constant 0 : index
    %1 = vector.load %arg2[%c0_1, %c0_2] : memref<32x5xbf16, #tpu.memory_space<vmem>>, vector<32x5xbf16>
    %2 = arith.extf %1 : vector<32x5xbf16> to vector<32x5xf32>
    %c0_3 = arith.constant 0 : index
    %c0_4 = arith.constant 0 : index
    %3 = vector.load %arg4[%c0_3, %c0_4] : memref<32x32xbf16, #tpu.memory_space<vmem>>, vector<32x32xbf16>
    %4 = arith.extf %3 : vector<32x32xbf16> to vector<32x32xf32>
    %c0_5 = arith.constant 0 : index
    %c0_6 = arith.constant 0 : index
    %5 = vector.load %arg6[%c0_5, %c0_6] : memref<1x32xbf16, #tpu.memory_space<vmem>>, vector<1x32xbf16>
    %6 = arith.extf %5 : vector<1x32xbf16> to vector<1x32xf32>
    %cst = arith.constant dense<0.000000e+00> : vector<32x128xf32>
    %7 = tpu.matmul %2, %0, %cst {dimension_numbers = #tpu.dot_dimension_numbers<[1], [1], [0], [0], [0, 0, 1, 0], [], []>} : vector<32x5xf32>, vector<128x5xf32>, vector<32x128xf32> -> vector<32x128xf32>
    %c0_7 = arith.constant 0 : index
    %c0_8 = arith.constant 0 : index
    %8 = vector.load %arg3[%c0_7, %c0_8] : memref<32x1xf32, #tpu.memory_space<vmem>>, vector<32x1xf32>
    %9 = vector.broadcast %8 : vector<32x1xf32> to vector<32x128xf32>
    %10 = arith.addf %7, %9 : vector<32x128xf32>
    %cst_9 = arith.constant 0.000000e+00 : f32
    %11 = vector.broadcast %cst_9 : f32 to vector<32x128xf32>
    %12 = arith.maximumf %10, %11 : vector<32x128xf32>
    %cst_10 = arith.constant dense<0.000000e+00> : vector<32x128xf32>
    %13 = tpu.matmul %4, %12, %cst_10 {dimension_numbers = #tpu.dot_dimension_numbers<[1], [0], [0], [1], [0, 0, 1, 1], [], []>} : vector<32x32xf32>, vector<32x128xf32>, vector<32x128xf32> -> vector<32x128xf32>
    %c0_11 = arith.constant 0 : index
    %c0_12 = arith.constant 0 : index
    %14 = vector.load %arg5[%c0_11, %c0_12] : memref<32x1xf32, #tpu.memory_space<vmem>>, vector<32x1xf32>
    %15 = vector.broadcast %14 : vector<32x1xf32> to vector<32x128xf32>
    %16 = arith.addf %13, %15 : vector<32x128xf32>
    %cst_13 = arith.constant 0.000000e+00 : f32
    %17 = vector.broadcast %cst_13 : f32 to vector<32x128xf32>
    %18 = arith.maximumf %16, %17 : vector<32x128xf32>
    %cst_14 = arith.constant dense<0.000000e+00> : vector<1x128xf32>
    %19 = tpu.matmul %6, %18, %cst_14 {dimension_numbers = #tpu.dot_dimension_numbers<[1], [0], [0], [1], [0, 0, 1, 1], [], []>} : vector<1x32xf32>, vector<32x128xf32>, vector<1x128xf32> -> vector<1x128xf32>
    %c0_15 = arith.constant 0 : index
    %c0_16 = arith.constant 0 : index
    %20 = vector.load %arg7[%c0_15, %c0_16] : memref<1x1xf32, #tpu.memory_space<vmem>>, vector<1x1xf32>
    %21 = vector.broadcast %20 : vector<1x1xf32> to vector<1x128xf32>
    %22 = arith.addf %19, %21 : vector<1x128xf32>
    %c0_17 = arith.constant 0 : index
    %c0_18 = arith.constant 0 : index
    %23 = vector.load %arg8[%c0_17, %c0_18] : memref<1x128xf32, #tpu.memory_space<vmem>>, vector<1x128xf32>
    tpu.vector_store %arg8[%c0_17, %c0_18], %22 {strides = array<i32>} : memref<1x128xf32, #tpu.memory_space<vmem>>, vector<1x128xf32>,
    return
  }
  func.func @transform_0(%arg0: i32) -> (i32, i32) {
    %c0_i32 = arith.constant 0 : i32
    %c0_i32_0 = arith.constant 0 : i32
    return %arg0, %c0_i32 : i32, i32
  }
  func.func @transform_1(%arg0: i32) -> (i32, i32) {
    %c0_i32 = arith.constant 0 : i32
    %c0_i32_0 = arith.constant 0 : i32
    %c0_i32_1 = arith.constant 0 : i32
    return %c0_i32, %c0_i32_0 : i32, i32
  }
  func.func @transform_2(%arg0: i32) -> (i32, i32) {
    %c0_i32 = arith.constant 0 : i32
    %c0_i32_0 = arith.constant 0 : i32
    %c0_i32_1 = arith.constant 0 : i32
    return %c0_i32, %c0_i32_0 : i32, i32
  }
  func.func @transform_3(%arg0: i32) -> (i32, i32) {
    %c0_i32 = arith.constant 0 : i32
    %c0_i32_0 = arith.constant 0 : i32
    %c0_i32_1 = arith.constant 0 : i32
    return %c0_i32, %c0_i32_0 : i32, i32
  }
  func.func @transform_4(%arg0: i32) -> (i32, i32) {
    %c0_i32 = arith.constant 0 : i32
    %c0_i32_0 = arith.constant 0 : i32
    %c0_i32_1 = arith.constant 0 : i32
    return %c0_i32, %c0_i32_0 : i32, i32
  }
  func.func @transform_5(%arg0: i32) -> (i32, i32) {
    %c0_i32 = arith.constant 0 : i32
    %c0_i32_0 = arith.constant 0 : i32
    %c0_i32_1 = arith.constant 0 : i32
    return %c0_i32, %c0_i32_0 : i32, i32
  }
  func.func @transform_6(%arg0: i32) -> (i32, i32) {
    %c0_i32 = arith.constant 0 : i32
    %c0_i32_0 = arith.constant 0 : i32
    %c0_i32_1 = arith.constant 0 : i32
    return %c0_i32, %c0_i32_0 : i32, i32
  }
  func.func @transform_7(%arg0: i32) -> (i32, i32) {
    %c0_i32 = arith.constant 0 : i32
    %c0_i32_0 = arith.constant 0 : i32
    return %c0_i32, %arg0 : i32, i32
  }
}

</mosaic_0001>

<llo_original>
// kernel: tpu_custom_call.1
$region0: #{tpu_custom_call.1}
  #allocation0 [shape = 'u32[]', space=smem, size = 0x4, offset = 0x4, fixed_abs, tag = 'smem constant byte address 0x4 - core index']
  #allocation1 [shape = 'u32[144,128]{1,0:T(1,128)}', space=vmem, size = 0x12000, scoped, tag = 'internal scratch']
  #allocation2 [shape = 'f32[1,1]{1,0:T(1,128)S(1)}', space=vmem, size = 0x200, scoped, tag = 'scoped memory for tpu_custom_call.1']
  %s0 = inlined_call_operand.vmem [shape: f32[128,5], index: 0, kind: input, shape index: {}]
  %s1 = inlined_call_operand.vmem [shape: bf16[32,5], index: 1, kind: input, shape index: {}]
  %s2 = inlined_call_operand.vmem [shape: f32[32,1], index: 2, kind: input, shape index: {}]
  %s3 = inlined_call_operand.vmem [shape: bf16[32,32], index: 3, kind: input, shape index: {}]
  %s4 = inlined_call_operand.vmem [shape: f32[32,1], index: 4, kind: input, shape index: {}]
  %s5 = inlined_call_operand.vmem [shape: bf16[1,32], index: 5, kind: input, shape index: {}]
  %s6 = inlined_call_operand.<no memory space> [shape: f32[1,1], index: 6, kind: input, shape index: {}]
  %s7 = inlined_call_operand.hbm [shape: f32[1,128], index: 7, kind: output, shape index: {}]
  %s8 = sld [smem:[#allocation0]]
  $region38: #{tpu_custom_call.1} parent=0
    _
  %s10 = ssub.s32 1, %s8
  %s11 = scalar_select 0, %s10, %s8
  %v12 = vstv %s6
  %13 = vst [vmem:[#allocation2] sm:$0x1] %v12
  $region1: #{tpu_custom_call.1} parent=0
    #allocation3 [shape = 'u8[512]{0}', space=vmem, size = 0x400, scoped, tag = 'output window, operand 0, single buffered']
    #allocation4 [shape = 's32[1]{0}', space=sflag, size = 0x4, scoped, tag = 'scoped memory for tpu_custom_call.1']
    %14 = vsyncpa [#allocation4], 0
    // Predicated region
    $region2: #{tpu_custom_call.1} parent=1 // pred_check
      _
    $region3: #{tpu_custom_call.1} parent=1 // pred_check_branch
      %16 = sbr.rel (0) target = $region5
    $region4: #{tpu_custom_call.1} parent=1 // pred_region
      _
    $region5: #{tpu_custom_call.1} parent=1 // pred_fallthru
      _
    // Predicated region
    $region6: #{tpu_custom_call.1} parent=1 // pred_check
      _
    $region7: #{tpu_custom_call.1} parent=1 // pred_check_branch
      %18 = sbr.rel (0) target = $region9
    $region8: #{tpu_custom_call.1} parent=1 // pred_region
      _
    $region9: #{tpu_custom_call.1} parent=1 // pred_fallthru
      _
    // Predicated region
    $region10: #{tpu_custom_call.1} parent=1 // pred_check
      _
    $region11: #{tpu_custom_call.1} parent=1 // pred_check_branch
      %20 = sbr.rel (0) target = $region13
    $region12: #{tpu_custom_call.1} parent=1 // pred_region
      _
    $region13: #{tpu_custom_call.1} parent=1 // pred_fallthru
      _
    // Predicated region
    $region14: #{tpu_custom_call.1} parent=1 // pred_check
      _
    $region15: #{tpu_custom_call.1} parent=1 // pred_check_branch
      %22 = sbr.rel (0) target = $region17
    $region16: #{tpu_custom_call.1} parent=1 // pred_region
      _
    $region17: #{tpu_custom_call.1} parent=1 // pred_fallthru
      _
    // Predicated region
    $region18: #{tpu_custom_call.1} parent=1 // pred_check
      _
    $region19: #{tpu_custom_call.1} parent=1 // pred_check_branch
      %24 = sbr.rel (0) target = $region21
    $region20: #{tpu_custom_call.1} parent=1 // pred_region
      _
    $region21: #{tpu_custom_call.1} parent=1 // pred_fallthru
      _
    // Predicated region
    $region22: #{tpu_custom_call.1} parent=1 // pred_check
      _
    $region23: #{tpu_custom_call.1} parent=1 // pred_check_branch
      %26 = sbr.rel (0) target = $region25
    $region24: #{tpu_custom_call.1} parent=1 // pred_region
      _
    $region25: #{tpu_custom_call.1} parent=1 // pred_fallthru
      _
    // Predicated region
    $region26: #{tpu_custom_call.1} parent=1 // pred_check
      _
    $region27: #{tpu_custom_call.1} parent=1 // pred_check_branch
      %28 = sbr.rel (0) target = $region29
    $region28: #{tpu_custom_call.1} parent=1 // pred_region
      _
    $region29: #{tpu_custom_call.1} parent=1 // pred_fallthru
      _
    %v29 = vld [vmem:[%s0] sm:$0xff]
    %v30 = vld [vmem:[%s0 + $0x8] sm:$0xff]
    %v31 = vld [vmem:[%s0 + $0x10] sm:$0xff]
    %v32 = vld [vmem:[%s0 + $0x18] sm:$0xff]
    %v33 = vld [vmem:[%s0 + $0x20] sm:$0xff]
    %v34 = vld [vmem:[%s0 + $0x28] sm:$0xff]
    %v35 = vld [vmem:[%s0 + $0x30] sm:$0xff]
    %v36 = vld [vmem:[%s0 + $0x38] sm:$0xff]
    %v37 = vld [vmem:[%s0 + $0x40] sm:$0xff]
    %v38 = vld [vmem:[%s0 + $0x48] sm:$0xff]
    %v39 = vld [vmem:[%s0 + $0x50] sm:$0xff]
    %v40 = vld [vmem:[%s0 + $0x58] sm:$0xff]
    %v41 = vld [vmem:[%s0 + $0x60] sm:$0xff]
    %v42 = vld [vmem:[%s0 + $0x68] sm:$0xff]
    %v43 = vld [vmem:[%s0 + $0x70] sm:$0xff]
    %v44 = vld [vmem:[%s0 + $0x78] sm:$0xff]
    %v45 = vld [vmem:[%s1] sm:$0xf]
    %v46 = vld [vmem:[%s1 + $0x4] sm:$0xf]
    %v47 = vld [vmem:[%s1 + $0x8] sm:$0xf]
    %v48 = vld [vmem:[%s1 + $0xc] sm:$0xf]
    %v49 = vunpack.c.l.bf16 %v45
    %v50 = vunpack.c.l.bf16 %v46
    %v51 = vunpack.c.l.bf16 %v47
    %v52 = vunpack.c.l.bf16 %v48
    %v53 = vld [vmem:[%s3] sm:$0xf]
    %v54 = vld [vmem:[%s3 + $0x4] sm:$0xf]
    %v55 = vld [vmem:[%s3 + $0x8] sm:$0xf]
    %v56 = vld [vmem:[%s3 + $0xc] sm:$0xf]
    %v57 = vunpack.c.l.bf16 %v53
    %v58 = vunpack.c.l.bf16 %v54
    %v59 = vunpack.c.l.bf16 %v55
    %v60 = vunpack.c.l.bf16 %v56
    %v61 = vld [vmem:[%s5] sm:$0x1]
    %v62 = vunpack.c.l.bf16 %v61
    %v63 = vld [vmem:[%s2] sm:$0xff]
    %v64 = vld [vmem:[%s2 + $0x8] sm:$0xff]
    %v65 = vld [vmem:[%s2 + $0x10] sm:$0xff]
    %v66 = vld [vmem:[%s2 + $0x18] sm:$0xff]
    %68 = vset.pattern.permute.xlu0 0
    %69 = vperm.xlu0 %68, %v63
    %v70 = vpop.permute.xlu0 %69
    %73 = vset.pattern.permute.xlu0 0
    %74 = vperm.xlu0 %73, %v64
    %v75 = vpop.permute.xlu0 %74
    %78 = vset.pattern.permute.xlu0 0
    %79 = vperm.xlu0 %78, %v65
    %v80 = vpop.permute.xlu0 %79
    %83 = vset.pattern.permute.xlu0 0
    %84 = vperm.xlu0 %83, %v66
    %v85 = vpop.permute.xlu0 %84
    %vm87 = vcmask 39936
    %v89 = vsel %vm87, %v49, 0
    %v92 = vsel %vm87, %v50, 0
    %v95 = vsel %vm87, %v51, 0
    %v98 = vsel %vm87, %v52, 0
    %v101 = vsel %vm87, %v29, 0
    %v104 = vsel %vm87, %v30, 0
    %v107 = vsel %vm87, %v31, 0
    %v110 = vsel %vm87, %v32, 0
    %v113 = vsel %vm87, %v33, 0
    %v116 = vsel %vm87, %v34, 0
    %v119 = vsel %vm87, %v35, 0
    %v122 = vsel %vm87, %v36, 0
    %v125 = vsel %vm87, %v37, 0
    %v128 = vsel %vm87, %v38, 0
    %v131 = vsel %vm87, %v39, 0
    %v134 = vsel %vm87, %v40, 0
    %v137 = vsel %vm87, %v41, 0
    %v140 = vsel %vm87, %v42, 0
    %v143 = vsel %vm87, %v43, 0
    %v146 = vsel %vm87, %v44, 0
    %148 = vmatprep.subr.mxu0 0.0
    %149 = vmatpush1.xpose.msra.mxu0 %v101
    %150 = vmatprep.subr.mxu0 0.0
    %151 = vmatpush1.xpose.msra.mxu0 %v104
    %152 = vmatprep.subr.mxu0 0.0
    %153 = vmatpush1.xpose.msra.mxu0 %v107
    %154 = vmatprep.subr.mxu0 0.0
    %155 = vmatpush1.xpose.msra.mxu0 %v110
    %156 = vmatprep.subr.mxu0 0.0
    %157 = vmatpush1.xpose.msra.mxu0 %v113
    %158 = vmatprep.subr.mxu0 0.0
    %159 = vmatpush1.xpose.msra.mxu0 %v116
    %160 = vmatprep.subr.mxu0 0.0
    %161 = vmatpush1.xpose.msra.mxu0 %v119
    %162 = vmatprep.subr.mxu0 0.0
    %163 = vmatpush1.xpose.msra.mxu0 %v122
    %164 = vmatprep.subr.mxu0 0.0
    %165 = vmatpush1.xpose.msra.mxu0 %v125
    %166 = vmatprep.subr.mxu0 0.0
    %167 = vmatpush1.xpose.msra.mxu0 %v128
    %168 = vmatprep.subr.mxu0 0.0
    %169 = vmatpush1.xpose.msra.mxu0 %v131
    %170 = vmatprep.subr.mxu0 0.0
    %171 = vmatpush1.xpose.msra.mxu0 %v134
    %172 = vmatprep.subr.mxu0 0.0
    %173 = vmatpush1.xpose.msra.mxu0 %v137
    %174 = vmatprep.subr.mxu0 0.0
    %175 = vmatpush1.xpose.msra.mxu0 %v140
    %176 = vmatprep.subr.mxu0 0.0
    %177 = vmatpush1.xpose.msra.mxu0 %v143
    %178 = vmatprep.subr.mxu0 0.0
    %179 = vmatpush1.xpose.msra.mxu0 %v146
    %180 = vmatprep.subr.mxu0 0.0
    %181 = vmatpush1.xpose.msra.mxu0 0.0
    %182 = vmatprep.subr.mxu0 0.0
    %183 = vmatpush1.xpose.msra.mxu0 0.0
    %184 = vmatprep.subr.mxu0 0.0
    %185 = vmatpush1.xpose.msra.mxu0 0.0
    %186 = vmatprep.subr.mxu0 0.0
    %187 = vmatpush1.xpose.msra.mxu0 0.0
    %188 = vmatprep.subr.mxu0 0.0
    %189 = vmatpush1.xpose.msra.mxu0 0.0
    %190 = vmatprep.subr.mxu0 0.0
    %191 = vmatpush1.xpose.msra.mxu0 0.0
    %192 = vmatprep.subr.mxu0 0.0
    %193 = vmatpush1.xpose.msra.mxu0 0.0
    %194 = vmatprep.subr.mxu0 0.0
    %195 = vmatpush1.xpose.msra.mxu0 0.0
    %196 = vmatprep.subr.mxu0 0.0
    %197 = vmatpush1.xpose.msra.mxu0 0.0
    %198 = vmatprep.subr.mxu0 0.0
    %199 = vmatpush1.xpose.msra.mxu0 0.0
    %200 = vmatprep.subr.mxu0 0.0
    %201 = vmatpush1.xpose.msra.mxu0 0.0
    %202 = vmatprep.subr.mxu0 0.0
    %203 = vmatpush1.xpose.msra.mxu0 0.0
    %204 = vmatprep.subr.mxu0 0.0
    %205 = vmatpush1.xpose.msra.mxu0 0.0
    %206 = vmatprep.subr.mxu0 0.0
    %207 = vmatpush1.xpose.msra.mxu0 0.0
    %208 = vmatprep.subr.mxu0 0.0
    %209 = vmatpush1.xpose.msra.mxu0 0.0
    %210 = vmatprep.subr.mxu0 0.0
    %211 = vmatpush1.xpose.msra.mxu0 0.0
    %212 = vmatprep.mubr.f32.mxu0 0.0
    %213 = vmatmul.mubr.f32.gmra.mrb[0].mxu0 %v89
    %v214 = vpop.f32.mrb[0].mxu0
    %v215 = vadd.f32 %v70, %v214
    %v216 = vpop.f32.mrb[0].mxu0
    %217 = vmatprep.mubr.f32.mxu0 0.0
    %218 = vmatmul.mubr.f32.gmra.mrb[0].mxu0 %v92
    %v219 = vpop.f32.mrb[0].mxu0
    %v220 = vadd.f32 %v75, %v219
    %v221 = vpop.f32.mrb[0].mxu0
    %222 = vmatprep.mubr.f32.mxu0 0.0
    %223 = vmatmul.mubr.f32.gmra.mrb[0].mxu0 %v95
    %v224 = vpop.f32.mrb[0].mxu0
    %v225 = vadd.f32 %v80, %v224
    %v226 = vpop.f32.mrb[0].mxu0
    %227 = vmatprep.mubr.f32.mxu0 0.0
    %228 = vmatmul.mubr.f32.gmra.mrb[0].mxu0 %v98
    %v229 = vpop.f32.mrb[0].mxu0
    %v230 = vadd.f32 %v85, %v229
    %v231 = vpop.f32.mrb[0].mxu0
    %232 = vdwg.mxu0
    %v233 = vmax.f32 %v215, 0.0
    %v234 = vmax.f32 %v220, 0.0
    %v235 = vmax.f32 %v225, 0.0
    %v236 = vmax.f32 %v230, 0.0
    %v237 = vld [vmem:[%s4] sm:$0xff]
    %v238 = vld [vmem:[%s4 + $0x8] sm:$0xff]
    %v239 = vld [vmem:[%s4 + $0x10] sm:$0xff]
    %v240 = vld [vmem:[%s4 + $0x18] sm:$0xff]
    %242 = vset.pattern.permute.xlu0 0
    %243 = vperm.xlu0 %242, %v237
    %v244 = vpop.permute.xlu0 %243
    %247 = vset.pattern.permute.xlu0 0
    %248 = vperm.xlu0 %247, %v238
    %v249 = vpop.permute.xlu0 %248
    %252 = vset.pattern.permute.xlu0 0
    %253 = vperm.xlu0 %252, %v239
    %v254 = vpop.permute.xlu0 %253
    %257 = vset.pattern.permute.xlu0 0
    %258 = vperm.xlu0 %257, %v240
    %v259 = vpop.permute.xlu0 %258
    %vm261 = vcmask 261120
    %v263 = vsel %vm261, %v57, 0
    %v266 = vsel %vm261, %v58, 0
    %v269 = vsel %vm261, %v59, 0
    %v272 = vsel %vm261, %v60, 0
    %274 = vmatprep.subr.mxu0 0.0
    %275 = vmatpush1.msra.mxu0 %v233
    %276 = vmatprep.subr.mxu0 0.0
    %277 = vmatpush1.msra.mxu0 %v234
    %278 = vmatprep.subr.mxu0 0.0
    %279 = vmatpush1.msra.mxu0 %v235
    %280 = vmatprep.subr.mxu0 0.0
    %281 = vmatpush1.msra.mxu0 %v236
    %282 = vmatprep.subr.mxu0 0.0
    %283 = vmatpush1.msra.mxu0 0.0
    %284 = vmatprep.subr.mxu0 0.0
    %285 = vmatpush1.msra.mxu0 0.0
    %286 = vmatprep.subr.mxu0 0.0
    %287 = vmatpush1.msra.mxu0 0.0
    %288 = vmatprep.subr.mxu0 0.0
    %289 = vmatpush1.msra.mxu0 0.0
    %290 = vmatprep.subr.mxu0 0.0
    %291 = vmatpush1.msra.mxu0 0.0
    %292 = vmatprep.subr.mxu0 0.0
    %293 = vmatpush1.msra.mxu0 0.0
    %294 = vmatprep.subr.mxu0 0.0
    %295 = vmatpush1.msra.mxu0 0.0
    %296 = vmatprep.subr.mxu0 0.0
    %297 = vmatpush1.msra.mxu0 0.0
    %298 = vmatprep.subr.mxu0 0.0
    %299 = vmatpush1.msra.mxu0 0.0
    %300 = vmatprep.subr.mxu0 0.0
    %301 = vmatpush1.msra.mxu0 0.0
    %302 = vmatprep.subr.mxu0 0.0
    %303 = vmatpush1.msra.mxu0 0.0
    %304 = vmatprep.subr.mxu0 0.0
    %305 = vmatpush1.msra.mxu0 0.0
    %306 = vmatprep.subr.mxu0 0.0
    %307 = vmatpush1.msra.mxu0 0.0
    %308 = vmatprep.subr.mxu0 0.0
    %309 = vmatpush1.msra.mxu0 0.0
    %310 = vmatprep.subr.mxu0 0.0
    %311 = vmatpush1.msra.mxu0 0.0
    %312 = vmatprep.subr.mxu0 0.0
    %313 = vmatpush1.msra.mxu0 0.0
    %314 = vmatprep.subr.mxu0 0.0
    %315 = vmatpush1.msra.mxu0 0.0
    %316 = vmatprep.subr.mxu0 0.0
    %317 = vmatpush1.msra.mxu0 0.0
    %318 = vmatprep.subr.mxu0 0.0
    %319 = vmatpush1.msra.mxu0 0.0
    %320 = vmatprep.subr.mxu0 0.0
    %321 = vmatpush1.msra.mxu0 0.0
    %322 = vmatprep.subr.mxu0 0.0
    %323 = vmatpush1.msra.mxu0 0.0
    %324 = vmatprep.subr.mxu0 0.0
    %325 = vmatpush1.msra.mxu0 0.0
    %326 = vmatprep.subr.mxu0 0.0
    %327 = vmatpush1.msra.mxu0 0.0
    %328 = vmatprep.subr.mxu0 0.0
    %329 = vmatpush1.msra.mxu0 0.0
    %330 = vmatprep.subr.mxu0 0.0
    %331 = vmatpush1.msra.mxu0 0.0
    %332 = vmatprep.subr.mxu0 0.0
    %333 = vmatpush1.msra.mxu0 0.0
    %334 = vmatprep.subr.mxu0 0.0
    %335 = vmatpush1.msra.mxu0 0.0
    %336 = vmatprep.subr.mxu0 0.0
    %337 = vmatpush1.msra.mxu0 0.0
    %338 = vmatprep.mubr.f32.mxu0 0.0
    %339 = vmatmul.mubr.f32.gmra.mrb[0].mxu0 %v263
    %v340 = vpop.f32.mrb[0].mxu0
    %v341 = vadd.f32 %v244, %v340
    %v342 = vpop.f32.mrb[0].mxu0
    %343 = vmatprep.mubr.f32.mxu0 0.0
    %344 = vmatmul.mubr.f32.gmra.mrb[0].mxu0 %v266
    %v345 = vpop.f32.mrb[0].mxu0
    %v346 = vadd.f32 %v249, %v345
    %v347 = vpop.f32.mrb[0].mxu0
    %348 = vmatprep.mubr.f32.mxu0 0.0
    %349 = vmatmul.mubr.f32.gmra.mrb[0].mxu0 %v269
    %v350 = vpop.f32.mrb[0].mxu0
    %v351 = vadd.f32 %v254, %v350
    %v352 = vpop.f32.mrb[0].mxu0
    %353 = vmatprep.mubr.f32.mxu0 0.0
    %354 = vmatmul.mubr.f32.gmra.mrb[0].mxu0 %v272
    %v355 = vpop.f32.mrb[0].mxu0
    %v356 = vadd.f32 %v259, %v355
    %v357 = vpop.f32.mrb[0].mxu0
    %358 = vdwg.mxu0
    %v359 = vmax.f32 %v341, 0.0
    %v360 = vmax.f32 %v346, 0.0
    %v361 = vmax.f32 %v351, 0.0
    %v362 = vmax.f32 %v356, 0.0
    %v363 = vld [vmem:[#allocation2] sm:$0x1]
    %365 = vset.pattern.permute.xlu0 0
    %366 = vperm.xlu0 %365, %v363
    %v367 = vpop.permute.xlu0 %366
    %v369 = vlaneseq
    %v370 = vshrl.u32 %v369, 7
    %v371 = vsub.s32 0, %v370
    %v372 = vrot.slane %v367, %v371
    %v374 = vsel %vm261, %v62, 0
    %376 = vmatprep.subr.mxu0 0.0
    %377 = vmatpush1.msra.mxu0 %v359
    %378 = vmatprep.subr.mxu0 0.0
    %379 = vmatpush1.msra.mxu0 %v360
    %380 = vmatprep.subr.mxu0 0.0
    %381 = vmatpush1.msra.mxu0 %v361
    %382 = vmatprep.subr.mxu0 0.0
    %383 = vmatpush1.msra.mxu0 %v362
    %384 = vmatprep.subr.mxu0 0.0
    %385 = vmatpush1.msra.mxu0 0.0
    %386 = vmatprep.subr.mxu0 0.0
    %387 = vmatpush1.msra.mxu0 0.0
    %388 = vmatprep.subr.mxu0 0.0
    %389 = vmatpush1.msra.mxu0 0.0
    %390 = vmatprep.subr.mxu0 0.0
    %391 = vmatpush1.msra.mxu0 0.0
    %392 = vmatprep.subr.mxu0 0.0
    %393 = vmatpush1.msra.mxu0 0.0
    %394 = vmatprep.subr.mxu0 0.0
    %395 = vmatpush1.msra.mxu0 0.0
    %396 = vmatprep.subr.mxu0 0.0
    %397 = vmatpush1.msra.mxu0 0.0
    %398 = vmatprep.subr.mxu0 0.0
    %399 = vmatpush1.msra.mxu0 0.0
    %400 = vmatprep.subr.mxu0 0.0
    %401 = vmatpush1.msra.mxu0 0.0
    %402 = vmatprep.subr.mxu0 0.0
    %403 = vmatpush1.msra.mxu0 0.0
    %404 = vmatprep.subr.mxu0 0.0
    %405 = vmatpush1.msra.mxu0 0.0
    %406 = vmatprep.subr.mxu0 0.0
    %407 = vmatpush1.msra.mxu0 0.0
    %408 = vmatprep.subr.mxu0 0.0
    %409 = vmatpush1.msra.mxu0 0.0
    %410 = vmatprep.subr.mxu0 0.0
    %411 = vmatpush1.msra.mxu0 0.0
    %412 = vmatprep.subr.mxu0 0.0
    %413 = vmatpush1.msra.mxu0 0.0
    %414 = vmatprep.subr.mxu0 0.0
    %415 = vmatpush1.msra.mxu0 0.0
    %416 = vmatprep.subr.mxu0 0.0
    %417 = vmatpush1.msra.mxu0 0.0
    %418 = vmatprep.subr.mxu0 0.0
    %419 = vmatpush1.msra.mxu0 0.0
    %420 = vmatprep.subr.mxu0 0.0
    %421 = vmatpush1.msra.mxu0 0.0
    %422 = vmatprep.subr.mxu0 0.0
    %423 = vmatpush1.msra.mxu0 0.0
    %424 = vmatprep.subr.mxu0 0.0
    %425 = vmatpush1.msra.mxu0 0.0
    %426 = vmatprep.subr.mxu0 0.0
    %427 = vmatpush1.msra.mxu0 0.0
    %428 = vmatprep.subr.mxu0 0.0
    %429 = vmatpush1.msra.mxu0 0.0
    %430 = vmatprep.subr.mxu0 0.0
    %431 = vmatpush1.msra.mxu0 0.0
    %432 = vmatprep.subr.mxu0 0.0
    %433 = vmatpush1.msra.mxu0 0.0
    %434 = vmatprep.subr.mxu0 0.0
    %435 = vmatpush1.msra.mxu0 0.0
    %436 = vmatprep.subr.mxu0 0.0
    %437 = vmatpush1.msra.mxu0 0.0
    %438 = vmatprep.subr.mxu0 0.0
    %439 = vmatpush1.msra.mxu0 0.0
    %440 = vmatprep.mubr.f32.mxu0 0.0
    %441 = vmatmul.mubr.f32.gmra.mrb[0].mxu0 %v374
    %v442 = vpop.f32.mrb[0].mxu0
    %v443 = vadd.f32 %v372, %v442
    %v444 = vpop.f32.mrb[0].mxu0
    %445 = vdwg.mxu0
    %446 = vst [vmem:[#allocation3] sm:$0x1] %v443
    // Predicated region
    $region30: #{tpu_custom_call.1} parent=1 // pred_check
      _
    $region31: #{tpu_custom_call.1} parent=1 // pred_check_branch
      %448 = sbr.rel (0) target = $region33
    $region32: #{tpu_custom_call.1} parent=1 // pred_region
      %s450 = ssub.s32 16, 16
      %451 = vsyncadd [#allocation4], %s450
      %s453 = sshll.u32 [#allocation3], 4
      %s454 = int_to_ptr.vmem [resolvable:$true] %s453
      %456 = dma.vmem_to_hbm [thread:$0]  %s454, 16, %s7, [#allocation4]
    $region33: #{tpu_custom_call.1} parent=1 // pred_fallthru
      _
    // Predicated region
    $region34: #{tpu_custom_call.1} parent=1 // pred_check
      _
    $region35: #{tpu_custom_call.1} parent=1 // pred_check_branch
      %458 = sbr.rel (0) target = $region37
    $region36: #{tpu_custom_call.1} parent=1 // pred_region
      %459 = dma.done [#allocation4], 16
    $region37: #{tpu_custom_call.1} parent=1 // pred_fallthru
      _
    %460 = vsyncpa [#allocation4], 1

</llo_original>
